<compile_context>
chip_gen: v6e
topology: v6e:2x2x1
jax: 0.10.0
libtpu: 0.0.40
codegen_flags: <defaults>
</compile_context>

<pallas_src>
import math

import jax
import jax.numpy as jnp
from jax.experimental import pallas as pl
from jax.experimental.pallas import tpu as pltpu


# ---------------- Pallas kernel ----------------

def _add_pe_kernel(x_ref, pe_ref, o_ref):
    # x: (TB, ts, d), pe: (ts, d) -> o: (TB, ts, d); pe broadcasts over TB.
    x = x_ref[...].astype(jnp.float32)
    pe = pe_ref[...].astype(jnp.float32)
    o_ref[...] = (x + pe).astype(o_ref.dtype)


def _choose_tiles(B, S, d, itemsize):
    """Pick (TB, ts) from a VMEM byte budget (d- and dtype-aware)."""
    TILE_TARGET = 2 * 1024 * 1024       # ~2 MiB per (ts, d) slab -> near HBM roofline
    WS_BUDGET = 24 * 1024 * 1024        # double-buffered working set budget

    row_bytes = max(1, d * itemsize)

    # Sequence tile: full S if it fits the per-slab target, else the largest
    # multiple of 8 rows under the target (the (8,128) BlockSpec rule).
    ts = S
    max_rows = TILE_TARGET // row_bytes
    if S > 8 and max_rows < S:
        ts = max(8, (min(max_rows, S) // 8) * 8)

    # Batch tile: 2 pipeline buffers x (x + out) x TB tiles + 2 x pe tile <= budget.
    per_tile = ts * d * itemsize
    avail = WS_BUDGET - 2 * per_tile
    TB = max(1, avail // (4 * per_tile)) if per_tile > 0 else B
    TB = int(min(TB, B))
    return TB, int(ts)


def add_positional_encoding(x, pe):
    """x: (B, S, d); pe: (S_full, d) with S_full >= S. Returns x + pe[None, :S, :]."""
    B, S, d = x.shape
    pe = pe[:S]
    if pe.dtype != x.dtype:
        pe = pe.astype(x.dtype)  # pe bytes match activation bytes (mem-bound add)

    # Lane-dense fold for narrow feature dims: (B, S, d) -> (B, S//k, k*d).
    folded = False
    if d < 128 and 128 % d == 0:
        k = 128 // d
        if S % k == 0:
            x = x.reshape(B, S // k, k * d)
            pe = pe.reshape(S // k, k * d)
            folded = True

    Bw, Sw, dw = x.shape
    TB, ts = _choose_tiles(Bw, Sw, dw, jnp.dtype(x.dtype).itemsize)

    grid = (pl.cdiv(Sw, ts), pl.cdiv(Bw, TB))  # seq outer (megacore), batch inner (pe reuse)

    out = pl.pallas_call(
        _add_pe_kernel,
        out_shape=jax.ShapeDtypeStruct((Bw, Sw, dw), x.dtype),
        grid=grid,
        in_specs=[
            pl.BlockSpec((TB, ts, dw), lambda s, b: (b, s, 0)),
            pl.BlockSpec((ts, dw), lambda s, b: (s, 0)),
        ],
        out_specs=pl.BlockSpec((TB, ts, dw), lambda s, b: (b, s, 0)),
        compiler_params=pltpu.CompilerParams(
            dimension_semantics=("parallel", "parallel"),
            vmem_limit_bytes=48 * 1024 * 1024,
        ),
    )(x, pe)

    if folded:
        out = out.reshape(B, S, d)
    return out


# ---------------- Module wrapper ----------------

class PositionalEncodingPallas:
    def __init__(self, d: int, seq_len: int, dropout: float, dtype=jnp.float32):
        self.d = d
        self.seq_len = seq_len
        self.dropout = dropout  # identity in eval mode

        # Mirror the PyTorch buffer construction exactly (constant buffer,
        # computed once, never recomputed per call).
        pos = jnp.arange(seq_len, dtype=jnp.float32)[:, None]          # (S, 1)
        i = jnp.arange(d)
        idx = ((i // 2) * 2).astype(jnp.float32)                       # 0,0,2,2,4,4,...
        div_term = jnp.exp(idx * (-math.log(10000.0) / d))             # (d,)
        pe = pos * div_term                                            # (S, d)
        pe = pe.at[:, 0::2].set(jnp.sin(pe[:, 0::2]))
        pe = pe.at[:, 1::2].set(jnp.cos(pe[:, 1::2]))
        self.pe = pe.astype(dtype)                                     # (seq_len, d)

    def __call__(self, x):
        # x: (B, S, d) with S <= seq_len
        return add_positional_encoding(x, self.pe)


# ---------------- Reference (pure JAX) for sanity check ----------------

def reference_forward(d, seq_len, x):
    pos = jnp.arange(seq_len, dtype=jnp.float32)[:, None]
    two_i = ((jnp.arange(d) // 2) * 2).astype(jnp.float32)
    angle = pos * jnp.exp(two_i * (-math.log(10000.0) / d))            # (S, d)
    pe = jnp.where((jnp.arange(d) % 2) == 0, jnp.sin(angle), jnp.cos(angle))
    return x + pe[None, : x.shape[1], :].astype(x.dtype)


if __name__ == "__main__":
    key = jax.random.PRNGKey(0)

    # Case 1: small d (32) -> exercises the lane-dense fold path.
    B, S, d = 2, 8, 32
    seq_len = 16  # buffer longer than the input sequence, like the PyTorch module
    mod = PositionalEncodingPallas(d=d, seq_len=seq_len, dropout=0.0)
    x = jax.random.normal(key, (B, S, d), jnp.float32)
    y = jax.block_until_ready(mod(x))
    ref = reference_forward(d, seq_len, x)
    assert y.shape == (B, S, d)
    assert jnp.allclose(y, ref, atol=1e-5, rtol=1e-5)

    # Case 2: d = 128 (no fold), multiple batches / seq rows, batch-blocked path.
    B2, S2, d2 = 3, 24, 128
    seq_len2 = 32
    mod2 = PositionalEncodingPallas(d=d2, seq_len=seq_len2, dropout=0.0)
    x2 = jax.random.normal(jax.random.PRNGKey(1), (B2, S2, d2), jnp.float32)
    y2 = jax.block_until_ready(mod2(x2))
    ref2 = reference_forward(d2, seq_len2, x2)
    assert y2.shape == (B2, S2, d2)
    assert jnp.allclose(y2, ref2, atol=1e-5, rtol=1e-5)

    # Case 3: bf16 activations with bf16-stored pe buffer.
    mod3 = PositionalEncodingPallas(d=d2, seq_len=seq_len2, dropout=0.0, dtype=jnp.bfloat16)
    x3 = jax.random.normal(jax.random.PRNGKey(2), (B2, S2, d2), jnp.bfloat16)
    y3 = jax.block_until_ready(mod3(x3))
    ref3 = reference_forward(d2, seq_len2, x3.astype(jnp.float32)).astype(jnp.bfloat16)
    assert y3.shape == (B2, S2, d2)
    assert jnp.allclose(y3.astype(jnp.float32), ref3.astype(jnp.float32), atol=2e-2, rtol=2e-2)

    print("KERNEL_OK")
</pallas_src>

<mosaic_0001>
module attributes {stable_mosaic.version = 11 : i64} {
  func.func @_add_pe_kernel(%arg0: i32, %arg1: i32, %arg2: memref<2x2x128xf32, #tpu.memory_space<vmem>>, %arg3: memref<2x128xf32, #tpu.memory_space<vmem>>, %arg4: memref<2x2x128xf32, #tpu.memory_space<vmem>>) attributes {dimension_semantics = [#tpu.dimension_semantics<parallel>, #tpu.dimension_semantics<parallel>], iteration_bounds = array<i64: 1, 1>, scalar_prefetch = 0 : i64, scratch_operands = 0 : i64, tpu.core_type = #tpu.core_type<tc>, window_params = [{transform_indices = @transform_0, window_bounds = array<i64: 2, 2, 128>}, {transform_indices = @transform_1, window_bounds = array<i64: 2, 128>}, {transform_indices = @transform_2, window_bounds = array<i64: 2, 2, 128>}]} {
    %c0 = arith.constant 0 : index
    %c0_0 = arith.constant 0 : index
    %c0_1 = arith.constant 0 : index
    %0 = vector.load %arg2[%c0, %c0_0, %c0_1] : memref<2x2x128xf32, #tpu.memory_space<vmem>>, vector<2x2x128xf32>
    %c0_2 = arith.constant 0 : index
    %c0_3 = arith.constant 0 : index
    %1 = vector.load %arg3[%c0_2, %c0_3] : memref<2x128xf32, #tpu.memory_space<vmem>>, vector<2x128xf32>
    %2 = vector.shape_cast %1 : vector<2x128xf32> to vector<1x2x128xf32>
    %3 = vector.broadcast %2 : vector<1x2x128xf32> to vector<2x2x128xf32>
    %4 = arith.addf %0, %3 : vector<2x2x128xf32>
    %c0_4 = arith.constant 0 : index
    %c0_5 = arith.constant 0 : index
    %c0_6 = arith.constant 0 : index
    %5 = vector.load %arg4[%c0_4, %c0_5, %c0_6] : memref<2x2x128xf32, #tpu.memory_space<vmem>>, vector<2x2x128xf32>
    tpu.vector_store %arg4[%c0_4, %c0_5, %c0_6], %4 {strides = array<i32>} : memref<2x2x128xf32, #tpu.memory_space<vmem>>, vector<2x2x128xf32>,
    return
  }
  func.func @transform_0(%arg0: i32, %arg1: i32) -> (i32, i32, i32) {
    %c0_i32 = arith.constant 0 : i32
    %c0_i32_0 = arith.constant 0 : i32
    return %arg1, %arg0, %c0_i32 : i32, i32, i32
  }
  func.func @transform_1(%arg0: i32, %arg1: i32) -> (i32, i32) {
    %c0_i32 = arith.constant 0 : i32
    %c0_i32_0 = arith.constant 0 : i32
    return %arg0, %c0_i32 : i32, i32
  }
  func.func @transform_2(%arg0: i32, %arg1: i32) -> (i32, i32, i32) {
    %c0_i32 = arith.constant 0 : i32
    %c0_i32_0 = arith.constant 0 : i32
    return %arg1, %arg0, %c0_i32 : i32, i32, i32
  }
}

</mosaic_0001>

<llo_original>
// kernel: tpu_custom_call.1
$region0: #{tpu_custom_call.1}
  #allocation0 [shape = 'u32[]', space=smem, size = 0x4, offset = 0x4, fixed_abs, tag = 'smem constant byte address 0x4 - core index']
  #allocation1 [shape = 'u32[144,128]{1,0:T(1,128)}', space=vmem, size = 0x12000, scoped, tag = 'internal scratch']
  %s0 = inlined_call_operand.hbm [shape: f32[2,2,128], index: 0, kind: input, shape index: {}]
  %s1 = inlined_call_operand.hbm [shape: f32[2,128], index: 1, kind: input, shape index: {}]
  %s2 = inlined_call_operand.hbm [shape: f32[2,2,128], index: 2, kind: output, shape index: {}]
  %s3 = sld [smem:[#allocation0]]
  $region26: #{tpu_custom_call.1} parent=0
    _
  %s5 = ssub.s32 1, %s3
  %s6 = scalar_select 0, %s5, %s3
  $region1: #{tpu_custom_call.1} parent=0
    #allocation2 [shape = 'u8[2048]{0}', space=vmem, size = 0x800, scoped, tag = 'input window, operand 0, single buffered']
    #allocation3 [shape = 's32[1]{0}', space=sflag, size = 0x4, scoped, tag = 'scoped memory for tpu_custom_call.1']
    #allocation4 [shape = 's32[1]{0}', space=sflag, size = 0x4, scoped, tag = 'scoped memory for tpu_custom_call.1']
    #allocation5 [shape = 'u8[1024]{0}', space=vmem, size = 0x400, scoped, tag = 'input window, operand 1, single buffered']
    #allocation6 [shape = 's32[1]{0}', space=sflag, size = 0x4, scoped, tag = 'scoped memory for tpu_custom_call.1']
    #allocation7 [shape = 'u8[2048]{0}', space=vmem, size = 0x800, scoped, tag = 'output window, operand 0, single buffered']
    %7 = vsyncpa [#allocation3], 0
    %8 = vsyncpa [#allocation6], 0
    %9 = vsyncpa [#allocation4], 0
    // Predicated region
    $region2: #{tpu_custom_call.1} parent=1 // pred_check
      _
    $region3: #{tpu_custom_call.1} parent=1 // pred_check_branch
      %11 = sbr.rel (0) target = $region5
    $region4: #{tpu_custom_call.1} parent=1 // pred_region
      %s13 = ssub.s32 64, 64
      %14 = vsyncadd [#allocation3], %s13
      %s15 = sshll.u32 [#allocation2], 4
      %s16 = int_to_ptr.vmem [resolvable:$true] %s15
      %21 = dma.hbm_to_vmem [thread:$0]  %s0, 64, %s16, [#allocation3], 32, 32, 2
    $region5: #{tpu_custom_call.1} parent=1 // pred_fallthru
      _
    // Predicated region
    $region6: #{tpu_custom_call.1} parent=1 // pred_check
      _
    $region7: #{tpu_custom_call.1} parent=1 // pred_check_branch
      %23 = sbr.rel (0) target = $region9
    $region8: #{tpu_custom_call.1} parent=1 // pred_region
      %s25 = ssub.s32 32, 32
      %26 = vsyncadd [#allocation6], %s25
      %s28 = sshll.u32 [#allocation5], 4
      %s29 = int_to_ptr.vmem [resolvable:$true] %s28
      %31 = dma.hbm_to_vmem [thread:$0]  %s1, 32, %s29, [#allocation6]
    $region9: #{tpu_custom_call.1} parent=1 // pred_fallthru
      _
    // Predicated region
    $region10: #{tpu_custom_call.1} parent=1 // pred_check
      _
    $region11: #{tpu_custom_call.1} parent=1 // pred_check_branch
      %33 = sbr.rel (0) target = $region13
    $region12: #{tpu_custom_call.1} parent=1 // pred_region
      %34 = dma.done [#allocation3], 64
    $region13: #{tpu_custom_call.1} parent=1 // pred_fallthru
      _
    // Predicated region
    $region14: #{tpu_custom_call.1} parent=1 // pred_check
      _
    $region15: #{tpu_custom_call.1} parent=1 // pred_check_branch
      %36 = sbr.rel (0) target = $region17
    $region16: #{tpu_custom_call.1} parent=1 // pred_region
      %37 = dma.done [#allocation6], 32
    $region17: #{tpu_custom_call.1} parent=1 // pred_fallthru
      _
    %v38 = vld [vmem:[#allocation2] sm:$0x3]
    %v39 = vld [vmem:[#allocation2 + $0x2] sm:$0x3]
    %v40 = vld [vmem:[#allocation5] sm:$0x3]
    %v41 = vadd.f32 %v38, %v40
    %v42 = vadd.f32 %v39, %v40
    %43 = vst [vmem:[#allocation7] sm:$0x3] %v41
    %44 = vst [vmem:[#allocation7 + $0x2] sm:$0x3] %v42
    // Predicated region
    $region18: #{tpu_custom_call.1} parent=1 // pred_check
      _
    $region19: #{tpu_custom_call.1} parent=1 // pred_check_branch
      %46 = sbr.rel (0) target = $region21
    $region20: #{tpu_custom_call.1} parent=1 // pred_region
      %s48 = ssub.s32 64, 64
      %49 = vsyncadd [#allocation4], %s48
      %s50 = sshll.u32 [#allocation7], 4
      %s51 = int_to_ptr.vmem [resolvable:$true] %s50
      %56 = dma.vmem_to_hbm [thread:$0]  %s51, 64, %s2, [#allocation4], 32, 32, 2
    $region21: #{tpu_custom_call.1} parent=1 // pred_fallthru
      _
    // Predicated region
    $region22: #{tpu_custom_call.1} parent=1 // pred_check
      _
    $region23: #{tpu_custom_call.1} parent=1 // pred_check_branch
      %58 = sbr.rel (0) target = $region25
    $region24: #{tpu_custom_call.1} parent=1 // pred_region
      %59 = dma.done [#allocation4], 64
    $region25: #{tpu_custom_call.1} parent=1 // pred_fallthru
      _
    %60 = vsyncpa [#allocation3], 1
    %61 = vsyncpa [#allocation6], 1
    %62 = vsyncpa [#allocation4], 1

</llo_original>
